<compile_context>
chip_gen: v7x
topology: tpu7x:2x2x1
jax: 0.10.0
libtpu: 0.0.40
codegen_flags: <defaults>
</compile_context>

<pallas_src>
import functools
import math

import jax
import jax.numpy as jnp
from jax.experimental import pallas as pl
from jax.experimental.pallas import tpu as pltpu


def _self_attention_kernel(
    x_ref,          # (rows, E)   input dtype (f32 from HBM; cast in-kernel)
    wqkv_ref,       # (E, 3E)     compute dtype (stacked q|k|v, scale folded into q)
    bqkv_ref,       # (1, 3E)     f32
    wo_ref,         # (E, E)      compute dtype (fused MHA out_proj @ outer out_proj)
    bo_ref,         # (1, E)      f32
    o_ref,          # (rows, E)   f32
    *,
    batch_tile,
    seq_len,
    embed_dim,
    approx_recip,
):
    compute_dtype = wqkv_ref.dtype
    # In-kernel cast (cheap VPU op hidden under the MXU) instead of a separate
    # un-hidden HBM cast pass in the wrapper.
    x = x_ref[...].astype(compute_dtype)                        # (rows, E)

    # Single stacked q/k/v projection: one (rows, E) x (E, 3E) MXU matmul,
    # f32 accumulation, single f32 bias add.
    qkv = jnp.dot(x, wqkv_ref[...], preferred_element_type=jnp.float32)
    qkv = qkv + bqkv_ref[...]                                   # (rows, 3E) f32

    q = qkv[:, :embed_dim]
    k = qkv[:, embed_dim:2 * embed_dim]
    v = qkv[:, 2 * embed_dim:]

    # Leading-dim split back to (Bt, S, E) for batched attention.
    qb = q.reshape(batch_tile, seq_len, embed_dim).astype(compute_dtype)
    kb = k.reshape(batch_tile, seq_len, embed_dim).astype(compute_dtype)
    vb = v.reshape(batch_tile, seq_len, embed_dim).astype(compute_dtype)

    # Scores (1/sqrt(E) already folded into the q weights): transpose-free
    # batched contraction over the feature dim (no XLU transpose).
    s = jnp.einsum("bqd,bkd->bqk", qb, kb,
                   preferred_element_type=jnp.float32)          # (Bt, S, S) f32
    # TODO(synk): for large S a flash-style KV-tiled online softmax is needed to
    # keep the (Bt, S, S) scores out of VMEM (crossover is ~2x earlier on v7x's
    # 64 MiB VMEM than on v5e/v6e's 128 MiB).

    # Numerically stable softmax in f32 (required on v5e: no bf16 VPU/EUP).
    m = jnp.max(s, axis=-1, keepdims=True)
    p = jnp.exp(s - m)
    denom = jnp.sum(p, axis=-1, keepdims=True)
    if approx_recip:
        attn = p * pl.reciprocal(denom, approx=True)            # EUP vrcp slot
    else:
        attn = p / denom                                        # exact (f32 path)

    ctx = jnp.einsum("bqk,bkd->bqd", attn.astype(compute_dtype), vb,
                     preferred_element_type=jnp.float32)        # (Bt, S, E) f32
    ctx = ctx.reshape(batch_tile * seq_len, embed_dim).astype(compute_dtype)

    # Fused (MHA out_proj then outer out_proj) projection.
    y = jnp.dot(ctx, wo_ref[...], preferred_element_type=jnp.float32)
    y = y + bo_ref[...]
    o_ref[...] = y.astype(o_ref.dtype)
    # NOTE: with E < 128 the output store is a masked vst.msk; if E stays this
    # small and the kernel becomes store-bound (v5e: single vst slot), pad the
    # fused out-proj N dim to 128 zero columns for a lane-dense output slab.


def _pick_batch_tile(batch, seq_len, *, target_rows=512, min_grid_steps=1):
    """Largest divisor bt of `batch` such that bt*seq_len <= max(target_rows, seq_len),
    bt*seq_len is sublane-aligned (x8) unless it covers the whole array, and the
    grid keeps at least `min_grid_steps` steps (pass 2 on v7x to use both TCs)."""
    best = None
    for cand in range(1, batch + 1):
        if batch % cand:
            continue
        if batch // cand < min_grid_steps:
            continue
        rows = cand * seq_len
        if rows > max(target_rows, seq_len):
            continue
        if rows != batch * seq_len and rows % 8 != 0:
            continue
        best = cand
    return best if best is not None else batch


def self_attention_pallas(x, params, *, matmul_dtype=jnp.bfloat16, min_grid_steps=1):
    """x: (B, S, E) float32.  params: dict of (E, E) weights and (1, E) biases."""
    B, S, E = x.shape
    f32 = jnp.float32

    # ---- Algebraic weight fusion (done once, outside the kernel) ----
    def fuse(w_a, b_a, w_b, b_b):
        w = w_a.astype(f32) @ w_b.astype(f32)
        b = b_a.astype(f32) @ w_b.astype(f32) + b_b.astype(f32)
        return w, b

    wq_f, bq_f = fuse(params["wq"], params["bq"], params["wqi"], params["bqi"])
    wk_f, bk_f = fuse(params["wk"], params["bk"], params["wki"], params["bki"])
    wv_f, bv_f = fuse(params["wv"], params["bv"], params["wvi"], params["bvi"])
    wo_f, bo_f = fuse(params["wmo"], params["bmo"], params["wo"], params["bo"])

    # Fold the 1/sqrt(E) attention scale into the fused q projection (zero cost).
    scale = 1.0 / math.sqrt(E)
    wq_f = wq_f * scale
    bq_f = bq_f * scale

    # Stack q/k/v into one (E, 3E) weight -> one projection matmul per tile.
    wqkv = jnp.concatenate([wq_f, wk_f, wv_f], axis=1).astype(matmul_dtype)
    bqkv = jnp.concatenate([bq_f, bk_f, bv_f], axis=1).astype(f32)
    wo_c = wo_f.astype(matmul_dtype)
    bo_c = bo_f.astype(f32)

    bt = _pick_batch_tile(B, S, target_rows=512, min_grid_steps=min_grid_steps)
    grid = (B // bt,)
    row_block = bt * S

    # x stays in its input dtype; the compute-dtype cast happens per-tile in-kernel.
    x2d = x.reshape(B * S, E)

    x_spec = pl.BlockSpec((row_block, E), lambda i: (i, 0))
    o_spec = pl.BlockSpec((row_block, E), lambda i: (i, 0))
    # Constant index_map: the same weight/bias VMEM blocks are reused every step.
    wqkv_spec = pl.BlockSpec((E, 3 * E), lambda i: (0, 0))
    bqkv_spec = pl.BlockSpec((1, 3 * E), lambda i: (0, 0))
    wo_spec = pl.BlockSpec((E, E), lambda i: (0, 0))
    bo_spec = pl.BlockSpec((1, E), lambda i: (0, 0))

    w_itemsize = jnp.dtype(matmul_dtype).itemsize
    x_itemsize = jnp.dtype(x.dtype).itemsize
    cost = pl.CostEstimate(
        flops=int(8 * B * S * E * E + 4 * B * S * S * E),
        transcendentals=int(B * S * S + B * S),
        bytes_accessed=int(
            B * S * E * x_itemsize          # x
            + B * S * E * 4                 # output (f32)
            + 4 * E * E * w_itemsize        # stacked qkv + fused out weights
            + 4 * E * 4                     # biases (f32)
        ),
    )

    approx_recip = jnp.dtype(matmul_dtype) != jnp.dtype(jnp.float32)

    kernel = functools.partial(
        _self_attention_kernel,
        batch_tile=bt, seq_len=S, embed_dim=E, approx_recip=bool(approx_recip),
    )

    out2d = pl.pallas_call(
        kernel,
        out_shape=jax.ShapeDtypeStruct((B * S, E), jnp.float32),
        grid_spec=pltpu.PrefetchScalarGridSpec(
            num_scalar_prefetch=0,
            grid=grid,
            in_specs=[x_spec, wqkv_spec, bqkv_spec, wo_spec, bo_spec],
            out_specs=o_spec,
        ),
        compiler_params=pltpu.CompilerParams(
            dimension_semantics=("parallel",),
        ),
        cost_estimate=cost,
    )(x2d, wqkv, bqkv, wo_c, bo_c)

    return out2d.reshape(B, S, E)


def _xavier_uniform(key, shape, gain=1.0):
    fan_in, fan_out = shape[0], shape[1]
    bound = gain * math.sqrt(6.0 / (fan_in + fan_out))
    return jax.random.uniform(key, shape, jnp.float32, -bound, bound)


def make_params(key, embed_dim):
    """Deterministic parameter init (same shapes as the PyTorch module)."""
    keys = jax.random.split(key, 16)
    g = 1.0 / math.sqrt(2.0)
    params = {
        # outer q/k/v projections (xavier_uniform, gain=1/sqrt(2)), stored (E, E)
        # for right-multiply.
        "wq": _xavier_uniform(keys[0], (embed_dim, embed_dim), g),
        "wk": _xavier_uniform(keys[1], (embed_dim, embed_dim), g),
        "wv": _xavier_uniform(keys[2], (embed_dim, embed_dim), g),
        "bq": jax.random.normal(keys[3], (1, embed_dim), jnp.float32) * 0.02,
        "bk": jax.random.normal(keys[4], (1, embed_dim), jnp.float32) * 0.02,
        "bv": jax.random.normal(keys[5], (1, embed_dim), jnp.float32) * 0.02,
        # MHA in_proj (xavier_uniform), biases zero per nn.MultiheadAttention init.
        "wqi": _xavier_uniform(keys[6], (embed_dim, embed_dim)),
        "wki": _xavier_uniform(keys[7], (embed_dim, embed_dim)),
        "wvi": _xavier_uniform(keys[8], (embed_dim, embed_dim)),
        "bqi": jnp.zeros((1, embed_dim), jnp.float32),
        "bki": jnp.zeros((1, embed_dim), jnp.float32),
        "bvi": jnp.zeros((1, embed_dim), jnp.float32),
        # MHA out_proj (bias zero).
        "wmo": _xavier_uniform(keys[9], (embed_dim, embed_dim)),
        "bmo": jnp.zeros((1, embed_dim), jnp.float32),
        # outer out_proj (xavier_uniform, bias zero).
        "wo": _xavier_uniform(keys[10], (embed_dim, embed_dim)),
        "bo": jnp.zeros((1, embed_dim), jnp.float32),
    }
    return params


def self_attention_ref(x, p):
    """Pure-JAX f32 reference of the same (un-fused, chained) forward pass."""
    def lin(a, w, b):
        return a @ w + b

    q = lin(x, p["wq"], p["bq"])
    k = lin(x, p["wk"], p["bk"])
    v = lin(x, p["wv"], p["bv"])
    q2 = lin(q, p["wqi"], p["bqi"])
    k2 = lin(k, p["wki"], p["bki"])
    v2 = lin(v, p["wvi"], p["bvi"])
    E = x.shape[-1]
    s = jnp.einsum("bqd,bkd->bqk", q2, k2) / math.sqrt(E)
    attn = jax.nn.softmax(s, axis=-1)
    ctx = jnp.einsum("bqk,bkd->bqd", attn, v2)
    y = lin(ctx, p["wmo"], p["bmo"])
    y = lin(y, p["wo"], p["bo"])
    return y


if __name__ == "__main__":
    B, S, E = 2, 8, 32  # batch, sequence, embed_dim

    key = jax.random.PRNGKey(0)
    kx, kp = jax.random.split(key)
    x = jax.random.normal(kx, (B, S, E), jnp.float32)
    params = make_params(kp, E)

    ref = self_attention_ref(x, params)

    # f32-operand path: exact-divide softmax (no approx reciprocal).  Tolerance
    # accounts for TPU default matmul precision (f32 dots execute as bf16 MXU
    # passes), under which the algebraically-fused weights diverge from the
    # un-fused reference at the ~1e-3..1e-2 level.
    out_f32 = jax.block_until_ready(
        self_attention_pallas(x, params, matmul_dtype=jnp.float32)
    )
    assert out_f32.shape == (B, S, E)
    assert jnp.allclose(out_f32, ref, atol=5e-2, rtol=5e-2), "f32 mismatch vs reference"

    # Fast path: bf16 MXU operands, f32 accumulation, f32 softmax, approx recip.
    out_bf16 = jax.block_until_ready(
        self_attention_pallas(x, params, matmul_dtype=jnp.bfloat16)
    )
    assert out_bf16.shape == (B, S, E)
    assert jnp.allclose(out_bf16, ref, atol=7.5e-2, rtol=7.5e-2), "bf16 mismatch vs reference"

    print("KERNEL_OK")
</pallas_src>

<mosaic_0001>
module attributes {stable_mosaic.version = 11 : i64} {
  func.func @_self_attention_kernel(%arg0: i32, %arg1: memref<16x32xf32, #tpu.memory_space<vmem>>, %arg2: memref<32x96xf32, #tpu.memory_space<vmem>>, %arg3: memref<1x96xf32, #tpu.memory_space<vmem>>, %arg4: memref<32x32xf32, #tpu.memory_space<vmem>>, %arg5: memref<1x32xf32, #tpu.memory_space<vmem>>, %arg6: memref<16x32xf32, #tpu.memory_space<vmem>>) attributes {dimension_semantics = [#tpu.dimension_semantics<parallel>], iteration_bounds = array<i64: 1>, scalar_prefetch = 0 : i64, scratch_operands = 0 : i64, tpu.core_type = #tpu.core_type<tc>, window_params = [{transform_indices = @transform_0, window_bounds = array<i64: 16, 32>}, {pipeline_mode = #tpu.pipeline_mode<synchronous>, transform_indices = @transform_1, window_bounds = array<i64: 32, 96>}, {pipeline_mode = #tpu.pipeline_mode<synchronous>, transform_indices = @transform_2, window_bounds = array<i64: 1, 96>}, {pipeline_mode = #tpu.pipeline_mode<synchronous>, transform_indices = @transform_3, window_bounds = array<i64: 32, 32>}, {pipeline_mode = #tpu.pipeline_mode<synchronous>, transform_indices = @transform_4, window_bounds = array<i64: 1, 32>}, {transform_indices = @transform_5, window_bounds = array<i64: 16, 32>}]} {
    %c0 = arith.constant 0 : index
    %c0_0 = arith.constant 0 : index
    %0 = vector.load %arg1[%c0, %c0_0] : memref<16x32xf32, #tpu.memory_space<vmem>>, vector<16x32xf32>
    %c0_1 = arith.constant 0 : index
    %c0_2 = arith.constant 0 : index
    %1 = vector.load %arg2[%c0_1, %c0_2] : memref<32x96xf32, #tpu.memory_space<vmem>>, vector<32x96xf32>
    %cst = arith.constant dense<0.000000e+00> : vector<16x96xf32>
    %2 = tpu.matmul %0, %1, %cst {dimension_numbers = #tpu.dot_dimension_numbers<[1], [0], [0], [1], [0, 0, 1, 1], [], []>} : vector<16x32xf32>, vector<32x96xf32>, vector<16x96xf32> -> vector<16x96xf32>
    %c0_3 = arith.constant 0 : index
    %c0_4 = arith.constant 0 : index
    %3 = vector.load %arg3[%c0_3, %c0_4] : memref<1x96xf32, #tpu.memory_space<vmem>>, vector<1x96xf32>
    %4 = vector.broadcast %3 : vector<1x96xf32> to vector<16x96xf32>
    %5 = arith.addf %2, %4 : vector<16x96xf32>
    %6 = vector.extract_strided_slice %5 {offsets = [0, 0], sizes = [16, 32], strides = [1, 1]} : vector<16x96xf32> to vector<16x32xf32>
    %7 = vector.extract_strided_slice %5 {offsets = [0, 32], sizes = [16, 32], strides = [1, 1]} : vector<16x96xf32> to vector<16x32xf32>
    %8 = vector.extract_strided_slice %5 {offsets = [0, 64], sizes = [16, 32], strides = [1, 1]} : vector<16x96xf32> to vector<16x32xf32>
    %9 = vector.shape_cast %6 : vector<16x32xf32> to vector<2x8x32xf32>
    %10 = vector.shape_cast %7 : vector<16x32xf32> to vector<2x8x32xf32>
    %11 = vector.shape_cast %8 : vector<16x32xf32> to vector<2x8x32xf32>
    "tpu.trace_start"() <{level = 10 : i32, message = "bqd,bkd->bqk"}> : () -> ()
    %cst_5 = arith.constant dense<0.000000e+00> : vector<2x8x8xf32>
    %12 = tpu.matmul %9, %10, %cst_5 {dimension_numbers = #tpu.dot_dimension_numbers<[2], [2], [1], [1], [0, 0, 0, 1, 1, 1], [0], [0]>} : vector<2x8x32xf32>, vector<2x8x32xf32>, vector<2x8x8xf32> -> vector<2x8x8xf32>
    "tpu.trace_stop"() : () -> ()
    %cst_6 = arith.constant dense<0xFF800000> : vector<2x8xf32>
    %13 = vector.multi_reduction <maximumf>, %12, %cst_6 [2] : vector<2x8x8xf32> to vector<2x8xf32>
    %14 = vector.shape_cast %13 : vector<2x8xf32> to vector<2x8x1xf32>
    %15 = vector.broadcast %14 : vector<2x8x1xf32> to vector<2x8x8xf32>
    %16 = arith.subf %12, %15 : vector<2x8x8xf32>
    %17 = math.exp %16 : vector<2x8x8xf32>
    %cst_7 = arith.constant dense<0.000000e+00> : vector<2x8xf32>
    %18 = vector.multi_reduction <add>, %17, %cst_7 [2] : vector<2x8x8xf32> to vector<2x8xf32>
    %19 = vector.shape_cast %18 : vector<2x8xf32> to vector<2x8x1xf32>
    %20 = vector.broadcast %19 : vector<2x8x1xf32> to vector<2x8x8xf32>
    %21 = arith.divf %17, %20 : vector<2x8x8xf32>
    "tpu.trace_start"() <{level = 10 : i32, message = "bqk,bkd->bqd"}> : () -> ()
    %cst_8 = arith.constant dense<0.000000e+00> : vector<2x8x32xf32>
    %22 = tpu.matmul %21, %11, %cst_8 {dimension_numbers = #tpu.dot_dimension_numbers<[2], [1], [1], [2], [0, 0, 0, 1, 1, 2], [0], [0]>} : vector<2x8x8xf32>, vector<2x8x32xf32>, vector<2x8x32xf32> -> vector<2x8x32xf32>
    "tpu.trace_stop"() : () -> ()
    %23 = vector.shape_cast %22 : vector<2x8x32xf32> to vector<16x32xf32>
    %c0_9 = arith.constant 0 : index
    %c0_10 = arith.constant 0 : index
    %24 = vector.load %arg4[%c0_9, %c0_10] : memref<32x32xf32, #tpu.memory_space<vmem>>, vector<32x32xf32>
    %cst_11 = arith.constant dense<0.000000e+00> : vector<16x32xf32>
    %25 = tpu.matmul %23, %24, %cst_11 {dimension_numbers = #tpu.dot_dimension_numbers<[1], [0], [0], [1], [0, 0, 1, 1], [], []>} : vector<16x32xf32>, vector<32x32xf32>, vector<16x32xf32> -> vector<16x32xf32>
    %c0_12 = arith.constant 0 : index
    %c0_13 = arith.constant 0 : index
    %26 = vector.load %arg5[%c0_12, %c0_13] : memref<1x32xf32, #tpu.memory_space<vmem>>, vector<1x32xf32>
    %27 = vector.broadcast %26 : vector<1x32xf32> to vector<16x32xf32>
    %28 = arith.addf %25, %27 : vector<16x32xf32>
    %c0_14 = arith.constant 0 : index
    %c0_15 = arith.constant 0 : index
    %29 = vector.load %arg6[%c0_14, %c0_15] : memref<16x32xf32, #tpu.memory_space<vmem>>, vector<16x32xf32>
    tpu.vector_store %arg6[%c0_14, %c0_15], %28 {strides = array<i32>} : memref<16x32xf32, #tpu.memory_space<vmem>>, vector<16x32xf32>,
    return
  }
  func.func @transform_0(%arg0: i32) -> (i32, i32) {
    %c0_i32 = arith.constant 0 : i32
    %c0_i32_0 = arith.constant 0 : i32
    return %arg0, %c0_i32 : i32, i32
  }
  func.func @transform_1(%arg0: i32) -> (i32, i32) {
    %c0_i32 = arith.constant 0 : i32
    %c0_i32_0 = arith.constant 0 : i32
    %c0_i32_1 = arith.constant 0 : i32
    return %c0_i32, %c0_i32_0 : i32, i32
  }
  func.func @transform_2(%arg0: i32) -> (i32, i32) {
    %c0_i32 = arith.constant 0 : i32
    %c0_i32_0 = arith.constant 0 : i32
    %c0_i32_1 = arith.constant 0 : i32
    return %c0_i32, %c0_i32_0 : i32, i32
  }
  func.func @transform_3(%arg0: i32) -> (i32, i32) {
    %c0_i32 = arith.constant 0 : i32
    %c0_i32_0 = arith.constant 0 : i32
    %c0_i32_1 = arith.constant 0 : i32
    return %c0_i32, %c0_i32_0 : i32, i32
  }
  func.func @transform_4(%arg0: i32) -> (i32, i32) {
    %c0_i32 = arith.constant 0 : i32
    %c0_i32_0 = arith.constant 0 : i32
    %c0_i32_1 = arith.constant 0 : i32
    return %c0_i32, %c0_i32_0 : i32, i32
  }
  func.func @transform_5(%arg0: i32) -> (i32, i32) {
    %c0_i32 = arith.constant 0 : i32
    %c0_i32_0 = arith.constant 0 : i32
    return %arg0, %c0_i32 : i32, i32
  }
}

</mosaic_0001>

<llo_original>
// kernel: tpu_custom_call.1
$region0: #{tpu_custom_call.1}
  #allocation0 [shape = 'u32[]', space=smem, size = 0x4, offset = 0x4, fixed_abs, tag = 'smem constant byte address 0x4 - core index']
  #allocation1 [shape = 'u32[144,128]{1,0:T(1,128)}', space=vmem, size = 0x12000, scoped, tag = 'internal scratch']
  %s0 = inlined_call_operand.hbm [shape: f32[16,32], index: 0, kind: input, shape index: {}]
  %s1 = inlined_call_operand.hbm [shape: f32[32,96], index: 1, kind: input, shape index: {}]
  %s2 = inlined_call_operand.vmem [shape: f32[1,96], index: 2, kind: input, shape index: {}]
  %s3 = inlined_call_operand.hbm [shape: f32[32,32], index: 3, kind: input, shape index: {}]
  %s4 = inlined_call_operand.vmem [shape: f32[1,32], index: 4, kind: input, shape index: {}]
  %s5 = inlined_call_operand.hbm [shape: f32[16,32], index: 5, kind: output, shape index: {}]
  %s6 = sld [smem:[#allocation0]]
  $region42: #{tpu_custom_call.1} parent=0
    _
  %s8 = ssub.s32 1, %s6
  %s9 = scalar_select 0, %s8, %s6
  $region1: #{tpu_custom_call.1} parent=0
    #allocation2 [shape = 'u8[8192]{0}', space=vmem, size = 0x2000, scoped, tag = 'input window, operand 0, single buffered']
    #allocation3 [shape = 's32[1]{0}', space=sflag, size = 0x4, scoped, tag = 'scoped memory for tpu_custom_call.1']
    #allocation4 [shape = 's32[1]{0}', space=sflag, size = 0x4, scoped, tag = 'scoped memory for tpu_custom_call.1']
    #allocation5 [shape = 'u8[16384]{0}', space=vmem, size = 0x4000, scoped, tag = 'input window, operand 1, single buffered']
    #allocation6 [shape = 's32[1]{0}', space=sflag, size = 0x4, scoped, tag = 'scoped memory for tpu_custom_call.1']
    #allocation7 [shape = 'u8[16384]{0}', space=vmem, size = 0x4000, scoped, tag = 'input window, operand 3, single buffered']
    #allocation8 [shape = 'u8[8192]{0}', space=vmem, size = 0x2000, scoped, tag = 'output window, operand 0, single buffered']
    %10 = vsyncpa [#allocation3], 0
    %11 = vsyncpa [#allocation6], 0
    %12 = vsyncpa [#allocation4], 0
    // Predicated region
    $region2: #{tpu_custom_call.1} parent=1 // pred_check
      _
    $region3: #{tpu_custom_call.1} parent=1 // pred_check_branch
      %14 = sbr.rel (0) target = $region5
    $region4: #{tpu_custom_call.1} parent=1 // pred_region
      %s16 = ssub.s32 256, 256
      %17 = vsyncadd [#allocation3], %s16
      %s18 = sshll.u32 [#allocation2], 4
      %s19 = int_to_ptr.vmem [resolvable:$true] %s18
      %24 = dma.hbm_to_vmem [thread:$0]  %s0, 256, %s19, [#allocation3], 128, 128, 8
    $region5: #{tpu_custom_call.1} parent=1 // pred_fallthru
      _
    // Predicated region
    $region6: #{tpu_custom_call.1} parent=1 // pred_check
      _
    $region7: #{tpu_custom_call.1} parent=1 // pred_check_branch
      %26 = sbr.rel (0) target = $region9
    $region8: #{tpu_custom_call.1} parent=1 // pred_region
      %s28 = ssub.s32 512, 512
      %29 = vsyncadd [#allocation6], %s28
      %s30 = sshll.u32 [#allocation5], 4
      %s31 = int_to_ptr.vmem [resolvable:$true] %s30
      %36 = dma.hbm_to_vmem [thread:$0]  %s1, 512, %s31, [#allocation6], 128, 128, 8
    $region9: #{tpu_custom_call.1} parent=1 // pred_fallthru
      _
    // Predicated region
    $region10: #{tpu_custom_call.1} parent=1 // pred_check
      _
    $region11: #{tpu_custom_call.1} parent=1 // pred_check_branch
      %38 = sbr.rel (0) target = $region13
    $region12: #{tpu_custom_call.1} parent=1 // pred_region
      _
    $region13: #{tpu_custom_call.1} parent=1 // pred_fallthru
      _
    // Predicated region
    $region14: #{tpu_custom_call.1} parent=1 // pred_check
      _
    $region15: #{tpu_custom_call.1} parent=1 // pred_check_branch
      %40 = sbr.rel (0) target = $region17
    $region16: #{tpu_custom_call.1} parent=1 // pred_region
      %s42 = ssub.s32 512, 512
      %43 = vsyncadd [#allocation6], %s42
      %s44 = sshll.u32 [#allocation7], 4
      %s45 = int_to_ptr.vmem [resolvable:$true] %s44
      %50 = dma.hbm_to_vmem [thread:$0]  %s3, 512, %s45, [#allocation6], 128, 128, 8
    $region17: #{tpu_custom_call.1} parent=1 // pred_fallthru
      _
    // Predicated region
    $region18: #{tpu_custom_call.1} parent=1 // pred_check
      _
    $region19: #{tpu_custom_call.1} parent=1 // pred_check_branch
      %52 = sbr.rel (0) target = $region21
    $region20: #{tpu_custom_call.1} parent=1 // pred_region
      _
    $region21: #{tpu_custom_call.1} parent=1 // pred_fallthru
      _
    // Predicated region
    $region22: #{tpu_custom_call.1} parent=1 // pred_check
      _
    $region23: #{tpu_custom_call.1} parent=1 // pred_check_branch
      %54 = sbr.rel (0) target = $region25
    $region24: #{tpu_custom_call.1} parent=1 // pred_region
      %55 = dma.done [#allocation3], 256
    $region25: #{tpu_custom_call.1} parent=1 // pred_fallthru
      _
    // Predicated region
    $region26: #{tpu_custom_call.1} parent=1 // pred_check
      _
    $region27: #{tpu_custom_call.1} parent=1 // pred_check_branch
      %57 = sbr.rel (0) target = $region29
    $region28: #{tpu_custom_call.1} parent=1 // pred_region
      %58 = dma.done [#allocation6], 512
    $region29: #{tpu_custom_call.1} parent=1 // pred_fallthru
      _
    // Predicated region
    $region30: #{tpu_custom_call.1} parent=1 // pred_check
      _
    $region31: #{tpu_custom_call.1} parent=1 // pred_check_branch
      %60 = sbr.rel (0) target = $region33
    $region32: #{tpu_custom_call.1} parent=1 // pred_region
      %61 = dma.done [#allocation6], 512
    $region33: #{tpu_custom_call.1} parent=1 // pred_fallthru
      _
    %v62 = vld [vmem:[#allocation2] sm:$0xff]
    %v63 = vld [vmem:[#allocation2 + $0x8] sm:$0xff]
    %v64 = vld [vmem:[#allocation5] sm:$0xff]
    %v65 = vld [vmem:[#allocation5 + $0x8] sm:$0xff]
    %v66 = vld [vmem:[#allocation5 + $0x10] sm:$0xff]
    %v67 = vld [vmem:[#allocation5 + $0x18] sm:$0xff]
    %v68 = vld [vmem:[%s2] sm:$0x1]
    %v70 = vlaneseq
    %v71 = vshrl.u32 %v70, 7
    %v72 = vsub.s32 0, %v71
    %v73 = vrot.slane %v68, %v72
    %vm75 = vcmask 261120
    %v77 = vsel %vm75, %v62, 0
    %v80 = vsel %vm75, %v63, 0
    %82 = vmatprep.subr.mxu0 0.0
    %83 = vmatpush1.msra.mxu0 %v64
    %84 = vmatprep.subr.mxu0 0.0
    %85 = vmatpush1.msra.mxu0 %v65
    %86 = vmatprep.subr.mxu0 0.0
    %87 = vmatpush1.msra.mxu0 %v66
    %88 = vmatprep.subr.mxu0 0.0
    %89 = vmatpush1.msra.mxu0 %v67
    %90 = vmatprep.subr.mxu0 0.0
    %91 = vmatpush1.msra.mxu0 0.0
    %92 = vmatprep.subr.mxu0 0.0
    %93 = vmatpush1.msra.mxu0 0.0
    %94 = vmatprep.subr.mxu0 0.0
    %95 = vmatpush1.msra.mxu0 0.0
    %96 = vmatprep.subr.mxu0 0.0
    %97 = vmatpush1.msra.mxu0 0.0
    %98 = vmatprep.subr.mxu0 0.0
    %99 = vmatpush1.msra.mxu0 0.0
    %100 = vmatprep.subr.mxu0 0.0
    %101 = vmatpush1.msra.mxu0 0.0
    %102 = vmatprep.subr.mxu0 0.0
    %103 = vmatpush1.msra.mxu0 0.0
    %104 = vmatprep.subr.mxu0 0.0
    %105 = vmatpush1.msra.mxu0 0.0
    %106 = vmatprep.subr.mxu0 0.0
    %107 = vmatpush1.msra.mxu0 0.0
    %108 = vmatprep.subr.mxu0 0.0
    %109 = vmatpush1.msra.mxu0 0.0
    %110 = vmatprep.subr.mxu0 0.0
    %111 = vmatpush1.msra.mxu0 0.0
    %112 = vmatprep.subr.mxu0 0.0
    %113 = vmatpush1.msra.mxu0 0.0
    %114 = vmatprep.subr.mxu0 0.0
    %115 = vmatpush1.msra.mxu0 0.0
    %116 = vmatprep.subr.mxu0 0.0
    %117 = vmatpush1.msra.mxu0 0.0
    %118 = vmatprep.subr.mxu0 0.0
    %119 = vmatpush1.msra.mxu0 0.0
    %120 = vmatprep.subr.mxu0 0.0
    %121 = vmatpush1.msra.mxu0 0.0
    %122 = vmatprep.subr.mxu0 0.0
    %123 = vmatpush1.msra.mxu0 0.0
    %124 = vmatprep.subr.mxu0 0.0
    %125 = vmatpush1.msra.mxu0 0.0
    %126 = vmatprep.subr.mxu0 0.0
    %127 = vmatpush1.msra.mxu0 0.0
    %128 = vmatprep.subr.mxu0 0.0
    %129 = vmatpush1.msra.mxu0 0.0
    %130 = vmatprep.subr.mxu0 0.0
    %131 = vmatpush1.msra.mxu0 0.0
    %132 = vmatprep.subr.mxu0 0.0
    %133 = vmatpush1.msra.mxu0 0.0
    %134 = vmatprep.subr.mxu0 0.0
    %135 = vmatpush1.msra.mxu0 0.0
    %136 = vmatprep.subr.mxu0 0.0
    %137 = vmatpush1.msra.mxu0 0.0
    %138 = vmatprep.subr.mxu0 0.0
    %139 = vmatpush1.msra.mxu0 0.0
    %140 = vmatprep.subr.mxu0 0.0
    %141 = vmatpush1.msra.mxu0 0.0
    %142 = vmatprep.subr.mxu0 0.0
    %143 = vmatpush1.msra.mxu0 0.0
    %144 = vmatprep.subr.mxu0 0.0
    %145 = vmatpush1.msra.mxu0 0.0
    %146 = vmatprep.mubr.f32.mxu0 0.0
    %147 = vmatmul.mubr.f32.gmra.mrb[0].mxu0 %v77
    %v148 = vpop.f32.mrb[0].mxu0
    %v149 = vadd.f32 %v73, %v148
    %v150 = vpop.f32.mrb[0].mxu0
    %151 = vmatprep.mubr.f32.mxu0 0.0
    %152 = vmatmul.mubr.f32.gmra.mrb[0].mxu0 %v80
    %v153 = vpop.f32.mrb[0].mxu0
    %v154 = vadd.f32 %v73, %v153
    %v155 = vpop.f32.mrb[0].mxu0
    %156 = vdwg.mxu0
    %158 = vrot.lane.b32.xlu0 %v149, 96
    %v159 = vpop.permute.xlu0 %158
    %v160 = vsel %vm75, %v149, 0
    %v162 = vsel %vm75, %v159, 0
    %164 = vmatprep.subr.mxu0 0.0
    %165 = vmatpush1.xpose.msra.mxu0 %v162
    %166 = vmatprep.subr.mxu0 0.0
    %167 = vmatpush1.xpose.msra.mxu0 0.0
    %168 = vmatprep.subr.mxu0 0.0
    %169 = vmatpush1.xpose.msra.mxu0 0.0
    %170 = vmatprep.subr.mxu0 0.0
    %171 = vmatpush1.xpose.msra.mxu0 0.0
    %172 = vmatprep.subr.mxu0 0.0
    %173 = vmatpush1.xpose.msra.mxu0 0.0
    %174 = vmatprep.subr.mxu0 0.0
    %175 = vmatpush1.xpose.msra.mxu0 0.0
    %176 = vmatprep.subr.mxu0 0.0
    %177 = vmatpush1.xpose.msra.mxu0 0.0
    %178 = vmatprep.subr.mxu0 0.0
    %179 = vmatpush1.xpose.msra.mxu0 0.0
    %180 = vmatprep.subr.mxu0 0.0
    %181 = vmatpush1.xpose.msra.mxu0 0.0
    %182 = vmatprep.subr.mxu0 0.0
    %183 = vmatpush1.xpose.msra.mxu0 0.0
    %184 = vmatprep.subr.mxu0 0.0
    %185 = vmatpush1.xpose.msra.mxu0 0.0
    %186 = vmatprep.subr.mxu0 0.0
    %187 = vmatpush1.xpose.msra.mxu0 0.0
    %188 = vmatprep.subr.mxu0 0.0
    %189 = vmatpush1.xpose.msra.mxu0 0.0
    %190 = vmatprep.subr.mxu0 0.0
    %191 = vmatpush1.xpose.msra.mxu0 0.0
    %192 = vmatprep.subr.mxu0 0.0
    %193 = vmatpush1.xpose.msra.mxu0 0.0
    %194 = vmatprep.subr.mxu0 0.0
    %195 = vmatpush1.xpose.msra.mxu0 0.0
    %196 = vmatprep.subr.mxu0 0.0
    %197 = vmatpush1.xpose.msra.mxu0 0.0
    %198 = vmatprep.subr.mxu0 0.0
    %199 = vmatpush1.xpose.msra.mxu0 0.0
    %200 = vmatprep.subr.mxu0 0.0
    %201 = vmatpush1.xpose.msra.mxu0 0.0
    %202 = vmatprep.subr.mxu0 0.0
    %203 = vmatpush1.xpose.msra.mxu0 0.0
    %204 = vmatprep.subr.mxu0 0.0
    %205 = vmatpush1.xpose.msra.mxu0 0.0
    %206 = vmatprep.subr.mxu0 0.0
    %207 = vmatpush1.xpose.msra.mxu0 0.0
    %208 = vmatprep.subr.mxu0 0.0
    %209 = vmatpush1.xpose.msra.mxu0 0.0
    %210 = vmatprep.subr.mxu0 0.0
    %211 = vmatpush1.xpose.msra.mxu0 0.0
    %212 = vmatprep.subr.mxu0 0.0
    %213 = vmatpush1.xpose.msra.mxu0 0.0
    %214 = vmatprep.subr.mxu0 0.0
    %215 = vmatpush1.xpose.msra.mxu0 0.0
    %216 = vmatprep.subr.mxu0 0.0
    %217 = vmatpush1.xpose.msra.mxu0 0.0
    %218 = vmatprep.subr.mxu0 0.0
    %219 = vmatpush1.xpose.msra.mxu0 0.0
    %220 = vmatprep.subr.mxu0 0.0
    %221 = vmatpush1.xpose.msra.mxu0 0.0
    %222 = vmatprep.subr.mxu0 0.0
    %223 = vmatpush1.xpose.msra.mxu0 0.0
    %224 = vmatprep.subr.mxu0 0.0
    %225 = vmatpush1.xpose.msra.mxu0 0.0
    %226 = vmatprep.subr.mxu0 0.0
    %227 = vmatpush1.xpose.msra.mxu0 0.0
    %228 = vmatprep.mubr.f32.mxu0 0.0
    %229 = vmatmul.mubr.f32.gmra.mrb[0].mxu0 %v160
    %v230 = vpop.f32.mrb[0].mxu0
    %v231 = vadd.f32 0.0, %v230
    %v232 = vpop.f32.mrb[0].mxu0
    %233 = vdwg.mxu0
    %235 = vrot.lane.b32.xlu0 %v154, 96
    %v236 = vpop.permute.xlu0 %235
    %v237 = vsel %vm75, %v154, 0
    %v239 = vsel %vm75, %v236, 0
    %241 = vmatprep.subr.mxu0 0.0
    %242 = vmatpush1.xpose.msra.mxu0 %v239
    %243 = vmatprep.subr.mxu0 0.0
    %244 = vmatpush1.xpose.msra.mxu0 0.0
    %245 = vmatprep.subr.mxu0 0.0
    %246 = vmatpush1.xpose.msra.mxu0 0.0
    %247 = vmatprep.subr.mxu0 0.0
    %248 = vmatpush1.xpose.msra.mxu0 0.0
    %249 = vmatprep.subr.mxu0 0.0
    %250 = vmatpush1.xpose.msra.mxu0 0.0
    %251 = vmatprep.subr.mxu0 0.0
    %252 = vmatpush1.xpose.msra.mxu0 0.0
    %253 = vmatprep.subr.mxu0 0.0
    %254 = vmatpush1.xpose.msra.mxu0 0.0
    %255 = vmatprep.subr.mxu0 0.0
    %256 = vmatpush1.xpose.msra.mxu0 0.0
    %257 = vmatprep.subr.mxu0 0.0
    %258 = vmatpush1.xpose.msra.mxu0 0.0
    %259 = vmatprep.subr.mxu0 0.0
    %260 = vmatpush1.xpose.msra.mxu0 0.0
    %261 = vmatprep.subr.mxu0 0.0
    %262 = vmatpush1.xpose.msra.mxu0 0.0
    %263 = vmatprep.subr.mxu0 0.0
    %264 = vmatpush1.xpose.msra.mxu0 0.0
    %265 = vmatprep.subr.mxu0 0.0
    %266 = vmatpush1.xpose.msra.mxu0 0.0
    %267 = vmatprep.subr.mxu0 0.0
    %268 = vmatpush1.xpose.msra.mxu0 0.0
    %269 = vmatprep.subr.mxu0 0.0
    %270 = vmatpush1.xpose.msra.mxu0 0.0
    %271 = vmatprep.subr.mxu0 0.0
    %272 = vmatpush1.xpose.msra.mxu0 0.0
    %273 = vmatprep.subr.mxu0 0.0
    %274 = vmatpush1.xpose.msra.mxu0 0.0
    %275 = vmatprep.subr.mxu0 0.0
    %276 = vmatpush1.xpose.msra.mxu0 0.0
    %277 = vmatprep.subr.mxu0 0.0
    %278 = vmatpush1.xpose.msra.mxu0 0.0
    %279 = vmatprep.subr.mxu0 0.0
    %280 = vmatpush1.xpose.msra.mxu0 0.0
    %281 = vmatprep.subr.mxu0 0.0
    %282 = vmatpush1.xpose.msra.mxu0 0.0
    %283 = vmatprep.subr.mxu0 0.0
    %284 = vmatpush1.xpose.msra.mxu0 0.0
    %285 = vmatprep.subr.mxu0 0.0
    %286 = vmatpush1.xpose.msra.mxu0 0.0
    %287 = vmatprep.subr.mxu0 0.0
    %288 = vmatpush1.xpose.msra.mxu0 0.0
    %289 = vmatprep.subr.mxu0 0.0
    %290 = vmatpush1.xpose.msra.mxu0 0.0
    %291 = vmatprep.subr.mxu0 0.0
    %292 = vmatpush1.xpose.msra.mxu0 0.0
    %293 = vmatprep.subr.mxu0 0.0
    %294 = vmatpush1.xpose.msra.mxu0 0.0
    %295 = vmatprep.subr.mxu0 0.0
    %296 = vmatpush1.xpose.msra.mxu0 0.0
    %297 = vmatprep.subr.mxu0 0.0
    %298 = vmatpush1.xpose.msra.mxu0 0.0
    %299 = vmatprep.subr.mxu0 0.0
    %300 = vmatpush1.xpose.msra.mxu0 0.0
    %301 = vmatprep.subr.mxu0 0.0
    %302 = vmatpush1.xpose.msra.mxu0 0.0
    %303 = vmatprep.subr.mxu0 0.0
    %304 = vmatpush1.xpose.msra.mxu0 0.0
    %305 = vmatprep.mubr.f32.mxu0 0.0
    %306 = vmatmul.mubr.f32.gmra.mrb[0].mxu0 %v237
    %v307 = vpop.f32.mrb[0].mxu0
    %v308 = vadd.f32 0.0, %v307
    %v309 = vpop.f32.mrb[0].mxu0
    %310 = vdwg.mxu0
    %vm311 = vcmask 64512
    %v312 = vsel %vm311, %v231, -inf
    %313 = vmax.xlane.f32.xlu0 %v312
    %v314 = vpop.xlane.xlu0 %313
    %v315 = vsel %vm311, %v308, -inf
    %316 = vmax.xlane.f32.xlu0 %v315
    %v317 = vpop.xlane.xlu0 %316
    %v318 = vsub.f32 %v231, %v314
    %v319 = vsub.f32 %v308, %v317
    %v320 = vmul.f32 %v318, 1.442695
    %v321 = vpow.pop %v320
    %v322 = vmul.f32 %v319, 1.442695
    %v323 = vpow.pop %v322
    %v324 = vsel %vm311, %v321, 0.0
    %325 = vadd.xlane.f32.xlu0 %v324
    %v326 = vpop.xlane.xlu0 %325
    %v327 = vsel %vm311, %v323, 0.0
    %328 = vadd.xlane.f32.xlu0 %v327
    %v329 = vpop.xlane.xlu0 %328
    %v330 = vrcp.pop %v326
    %v331 = vmul.f32 %v321, %v330
    %v332 = vrcp.pop %v329
    %v333 = vmul.f32 %v323, %v332
    %334 = vrot.lane.b32.xlu0 %v149, 64
    %v335 = vpop.permute.xlu0 %334
    %v338 = vsel %vm311, %v331, 0
    %340 = vmatprep.subr.mxu0 0.0
    %341 = vmatpush1.msra.mxu0 %v335
    %342 = vmatprep.subr.mxu0 0.0
    %343 = vmatpush1.msra.mxu0 0.0
    %344 = vmatprep.subr.mxu0 0.0
    %345 = vmatpush1.msra.mxu0 0.0
    %346 = vmatprep.subr.mxu0 0.0
    %347 = vmatpush1.msra.mxu0 0.0
    %348 = vmatprep.subr.mxu0 0.0
    %349 = vmatpush1.msra.mxu0 0.0
    %350 = vmatprep.subr.mxu0 0.0
    %351 = vmatpush1.msra.mxu0 0.0
    %352 = vmatprep.subr.mxu0 0.0
    %353 = vmatpush1.msra.mxu0 0.0
    %354 = vmatprep.subr.mxu0 0.0
    %355 = vmatpush1.msra.mxu0 0.0
    %356 = vmatprep.subr.mxu0 0.0
    %357 = vmatpush1.msra.mxu0 0.0
    %358 = vmatprep.subr.mxu0 0.0
    %359 = vmatpush1.msra.mxu0 0.0
    %360 = vmatprep.subr.mxu0 0.0
    %361 = vmatpush1.msra.mxu0 0.0
    %362 = vmatprep.subr.mxu0 0.0
    %363 = vmatpush1.msra.mxu0 0.0
    %364 = vmatprep.subr.mxu0 0.0
    %365 = vmatpush1.msra.mxu0 0.0
    %366 = vmatprep.subr.mxu0 0.0
    %367 = vmatpush1.msra.mxu0 0.0
    %368 = vmatprep.subr.mxu0 0.0
    %369 = vmatpush1.msra.mxu0 0.0
    %370 = vmatprep.subr.mxu0 0.0
    %371 = vmatpush1.msra.mxu0 0.0
    %372 = vmatprep.subr.mxu0 0.0
    %373 = vmatpush1.msra.mxu0 0.0
    %374 = vmatprep.subr.mxu0 0.0
    %375 = vmatpush1.msra.mxu0 0.0
    %376 = vmatprep.subr.mxu0 0.0
    %377 = vmatpush1.msra.mxu0 0.0
    %378 = vmatprep.subr.mxu0 0.0
    %379 = vmatpush1.msra.mxu0 0.0
    %380 = vmatprep.subr.mxu0 0.0
    %381 = vmatpush1.msra.mxu0 0.0
    %382 = vmatprep.subr.mxu0 0.0
    %383 = vmatpush1.msra.mxu0 0.0
    %384 = vmatprep.subr.mxu0 0.0
    %385 = vmatpush1.msra.mxu0 0.0
    %386 = vmatprep.subr.mxu0 0.0
    %387 = vmatpush1.msra.mxu0 0.0
    %388 = vmatprep.subr.mxu0 0.0
    %389 = vmatpush1.msra.mxu0 0.0
    %390 = vmatprep.subr.mxu0 0.0
    %391 = vmatpush1.msra.mxu0 0.0
    %392 = vmatprep.subr.mxu0 0.0
    %393 = vmatpush1.msra.mxu0 0.0
    %394 = vmatprep.subr.mxu0 0.0
    %395 = vmatpush1.msra.mxu0 0.0
    %396 = vmatprep.subr.mxu0 0.0
    %397 = vmatpush1.msra.mxu0 0.0
    %398 = vmatprep.subr.mxu0 0.0
    %399 = vmatpush1.msra.mxu0 0.0
    %400 = vmatprep.subr.mxu0 0.0
    %401 = vmatpush1.msra.mxu0 0.0
    %402 = vmatprep.subr.mxu0 0.0
    %403 = vmatpush1.msra.mxu0 0.0
    %404 = vmatprep.mubr.f32.mxu0 0.0
    %405 = vmatmul.mubr.f32.gmra.mrb[0].mxu0 %v338
    %v406 = vpop.f32.mrb[0].mxu0
    %v407 = vadd.f32 0.0, %v406
    %v408 = vpop.f32.mrb[0].mxu0
    %409 = vdwg.mxu0
    %410 = vrot.lane.b32.xlu0 %v154, 64
    %v411 = vpop.permute.xlu0 %410
    %v414 = vsel %vm311, %v333, 0
    %416 = vmatprep.subr.mxu0 0.0
    %417 = vmatpush1.msra.mxu0 %v411
    %418 = vmatprep.subr.mxu0 0.0
    %419 = vmatpush1.msra.mxu0 0.0
    %420 = vmatprep.subr.mxu0 0.0
    %421 = vmatpush1.msra.mxu0 0.0
    %422 = vmatprep.subr.mxu0 0.0
    %423 = vmatpush1.msra.mxu0 0.0
    %424 = vmatprep.subr.mxu0 0.0
    %425 = vmatpush1.msra.mxu0 0.0
    %426 = vmatprep.subr.mxu0 0.0
    %427 = vmatpush1.msra.mxu0 0.0
    %428 = vmatprep.subr.mxu0 0.0
    %429 = vmatpush1.msra.mxu0 0.0
    %430 = vmatprep.subr.mxu0 0.0
    %431 = vmatpush1.msra.mxu0 0.0
    %432 = vmatprep.subr.mxu0 0.0
    %433 = vmatpush1.msra.mxu0 0.0
    %434 = vmatprep.subr.mxu0 0.0
    %435 = vmatpush1.msra.mxu0 0.0
    %436 = vmatprep.subr.mxu0 0.0
    %437 = vmatpush1.msra.mxu0 0.0
    %438 = vmatprep.subr.mxu0 0.0
    %439 = vmatpush1.msra.mxu0 0.0
    %440 = vmatprep.subr.mxu0 0.0
    %441 = vmatpush1.msra.mxu0 0.0
    %442 = vmatprep.subr.mxu0 0.0
    %443 = vmatpush1.msra.mxu0 0.0
    %444 = vmatprep.subr.mxu0 0.0
    %445 = vmatpush1.msra.mxu0 0.0
    %446 = vmatprep.subr.mxu0 0.0
    %447 = vmatpush1.msra.mxu0 0.0
    %448 = vmatprep.subr.mxu0 0.0
    %449 = vmatpush1.msra.mxu0 0.0
    %450 = vmatprep.subr.mxu0 0.0
    %451 = vmatpush1.msra.mxu0 0.0
    %452 = vmatprep.subr.mxu0 0.0
    %453 = vmatpush1.msra.mxu0 0.0
    %454 = vmatprep.subr.mxu0 0.0
    %455 = vmatpush1.msra.mxu0 0.0
    %456 = vmatprep.subr.mxu0 0.0
    %457 = vmatpush1.msra.mxu0 0.0
    %458 = vmatprep.subr.mxu0 0.0
    %459 = vmatpush1.msra.mxu0 0.0
    %460 = vmatprep.subr.mxu0 0.0
    %461 = vmatpush1.msra.mxu0 0.0
    %462 = vmatprep.subr.mxu0 0.0
    %463 = vmatpush1.msra.mxu0 0.0
    %464 = vmatprep.subr.mxu0 0.0
    %465 = vmatpush1.msra.mxu0 0.0
    %466 = vmatprep.subr.mxu0 0.0
    %467 = vmatpush1.msra.mxu0 0.0
    %468 = vmatprep.subr.mxu0 0.0
    %469 = vmatpush1.msra.mxu0 0.0
    %470 = vmatprep.subr.mxu0 0.0
    %471 = vmatpush1.msra.mxu0 0.0
    %472 = vmatprep.subr.mxu0 0.0
    %473 = vmatpush1.msra.mxu0 0.0
    %474 = vmatprep.subr.mxu0 0.0
    %475 = vmatpush1.msra.mxu0 0.0
    %476 = vmatprep.subr.mxu0 0.0
    %477 = vmatpush1.msra.mxu0 0.0
    %478 = vmatprep.subr.mxu0 0.0
    %479 = vmatpush1.msra.mxu0 0.0
    %480 = vmatprep.mubr.f32.mxu0 0.0
    %481 = vmatmul.mubr.f32.gmra.mrb[0].mxu0 %v414
    %v482 = vpop.f32.mrb[0].mxu0
    %v483 = vadd.f32 0.0, %v482
    %v484 = vpop.f32.mrb[0].mxu0
    %485 = vdwg.mxu0
    %v486 = vld [vmem:[#allocation7] sm:$0xff]
    %v487 = vld [vmem:[#allocation7 + $0x8] sm:$0xff]
    %v488 = vld [vmem:[#allocation7 + $0x10] sm:$0xff]
    %v489 = vld [vmem:[#allocation7 + $0x18] sm:$0xff]
    %v490 = vld [vmem:[%s4] sm:$0x1]
    %v492 = vlaneseq
    %v493 = vshrl.u32 %v492, 7
    %v494 = vsub.s32 0, %v493
    %v495 = vrot.slane %v490, %v494
    %v498 = vsel %vm75, %v407, 0
    %v501 = vsel %vm75, %v483, 0
    %503 = vmatprep.subr.mxu0 0.0
    %504 = vmatpush1.msra.mxu0 %v486
    %505 = vmatprep.subr.mxu0 0.0
    %506 = vmatpush1.msra.mxu0 %v487
    %507 = vmatprep.subr.mxu0 0.0
    %508 = vmatpush1.msra.mxu0 %v488
    %509 = vmatprep.subr.mxu0 0.0
    %510 = vmatpush1.msra.mxu0 %v489
    %511 = vmatprep.subr.mxu0 0.0
    %512 = vmatpush1.msra.mxu0 0.0
    %513 = vmatprep.subr.mxu0 0.0
    %514 = vmatpush1.msra.mxu0 0.0
    %515 = vmatprep.subr.mxu0 0.0
    %516 = vmatpush1.msra.mxu0 0.0
    %517 = vmatprep.subr.mxu0 0.0
    %518 = vmatpush1.msra.mxu0 0.0
    %519 = vmatprep.subr.mxu0 0.0
    %520 = vmatpush1.msra.mxu0 0.0
    %521 = vmatprep.subr.mxu0 0.0
    %522 = vmatpush1.msra.mxu0 0.0
    %523 = vmatprep.subr.mxu0 0.0
    %524 = vmatpush1.msra.mxu0 0.0
    %525 = vmatprep.subr.mxu0 0.0
    %526 = vmatpush1.msra.mxu0 0.0
    %527 = vmatprep.subr.mxu0 0.0
    %528 = vmatpush1.msra.mxu0 0.0
    %529 = vmatprep.subr.mxu0 0.0
    %530 = vmatpush1.msra.mxu0 0.0
    %531 = vmatprep.subr.mxu0 0.0
    %532 = vmatpush1.msra.mxu0 0.0
    %533 = vmatprep.subr.mxu0 0.0
    %534 = vmatpush1.msra.mxu0 0.0
    %535 = vmatprep.subr.mxu0 0.0
    %536 = vmatpush1.msra.mxu0 0.0
    %537 = vmatprep.subr.mxu0 0.0
    %538 = vmatpush1.msra.mxu0 0.0
    %539 = vmatprep.subr.mxu0 0.0
    %540 = vmatpush1.msra.mxu0 0.0
    %541 = vmatprep.subr.mxu0 0.0
    %542 = vmatpush1.msra.mxu0 0.0
    %543 = vmatprep.subr.mxu0 0.0
    %544 = vmatpush1.msra.mxu0 0.0
    %545 = vmatprep.subr.mxu0 0.0
    %546 = vmatpush1.msra.mxu0 0.0
    %547 = vmatprep.subr.mxu0 0.0
    %548 = vmatpush1.msra.mxu0 0.0
    %549 = vmatprep.subr.mxu0 0.0
    %550 = vmatpush1.msra.mxu0 0.0
    %551 = vmatprep.subr.mxu0 0.0
    %552 = vmatpush1.msra.mxu0 0.0
    %553 = vmatprep.subr.mxu0 0.0
    %554 = vmatpush1.msra.mxu0 0.0
    %555 = vmatprep.subr.mxu0 0.0
    %556 = vmatpush1.msra.mxu0 0.0
    %557 = vmatprep.subr.mxu0 0.0
    %558 = vmatpush1.msra.mxu0 0.0
    %559 = vmatprep.subr.mxu0 0.0
    %560 = vmatpush1.msra.mxu0 0.0
    %561 = vmatprep.subr.mxu0 0.0
    %562 = vmatpush1.msra.mxu0 0.0
    %563 = vmatprep.subr.mxu0 0.0
    %564 = vmatpush1.msra.mxu0 0.0
    %565 = vmatprep.subr.mxu0 0.0
    %566 = vmatpush1.msra.mxu0 0.0
    %567 = vmatprep.mubr.f32.mxu0 0.0
    %568 = vmatmul.mubr.f32.gmra.mrb[0].mxu0 %v498
    %v569 = vpop.f32.mrb[0].mxu0
    %v570 = vadd.f32 %v495, %v569
    %v571 = vpop.f32.mrb[0].mxu0
    %572 = vmatprep.mubr.f32.mxu0 0.0
    %573 = vmatmul.mubr.f32.gmra.mrb[0].mxu0 %v501
    %v574 = vpop.f32.mrb[0].mxu0
    %v575 = vadd.f32 %v495, %v574
    %v576 = vpop.f32.mrb[0].mxu0
    %577 = vdwg.mxu0
    %578 = vst.msk [vmem:[#allocation8] sm:$0xff] %vm75, %v570
    %579 = vst.msk [vmem:[#allocation8 + $0x8] sm:$0xff] %vm75, %v575
    // Predicated region
    $region34: #{tpu_custom_call.1} parent=1 // pred_check
      _
    $region35: #{tpu_custom_call.1} parent=1 // pred_check_branch
      %581 = sbr.rel (0) target = $region37
    $region36: #{tpu_custom_call.1} parent=1 // pred_region
      %s583 = ssub.s32 256, 256
      %584 = vsyncadd [#allocation4], %s583
      %s585 = sshll.u32 [#allocation8], 4
      %s586 = int_to_ptr.vmem [resolvable:$true] %s585
      %591 = dma.vmem_to_hbm [thread:$0]  %s586, 256, %s5, [#allocation4], 128, 128, 8
    $region37: #{tpu_custom_call.1} parent=1 // pred_fallthru
      _
    // Predicated region
    $region38: #{tpu_custom_call.1} parent=1 // pred_check
      _
    $region39: #{tpu_custom_call.1} parent=1 // pred_check_branch
      %593 = sbr.rel (0) target = $region41
    $region40: #{tpu_custom_call.1} parent=1 // pred_region
      %594 = dma.done [#allocation4], 256
    $region41: #{tpu_custom_call.1} parent=1 // pred_fallthru
      _
    %595 = vsyncpa [#allocation3], 1
    %596 = vsyncpa [#allocation6], 1
    %597 = vsyncpa [#allocation4], 1

</llo_original>
